<compile_context>
chip_gen: v6e
topology: v6e:2x2x1
jax: 0.10.0
libtpu: 0.0.40
codegen_flags: <defaults>
</compile_context>

<pallas_src>
import functools

import jax
import jax.numpy as jnp
from jax.experimental import pallas as pl
from jax.experimental.pallas import tpu as pltpu


def _conv_block_kernel(x_ref, w_ref, b_ref, o_ref, *, num_taps):
    # x_ref: (NB, C_in, TL + K - 1)   input tile with halo (compute dtype)
    # w_ref: (C_out, C_in * K)        BN-scale-folded weight, tap-major rows
    # b_ref: (C_out, 1)  f32          fused conv bias + BN shift
    # o_ref: (NB, C_out, TL)          lane-dense output tile
    K = num_taps
    NB = x_ref.shape[0]
    TL = o_ref.shape[-1]
    w = w_ref[...]
    b = b_ref[...]

    for n in range(NB):  # static unroll over the batch block
        xb = x_ref[n]  # (C_in, TL + K - 1)
        # In-register im2col: K shifted lane-slices stacked along sublanes
        # -> single MXU matmul with a C_in*K contraction instead of K pushes.
        col = jnp.concatenate([xb[:, k:k + TL] for k in range(K)], axis=0)
        acc = jnp.dot(w, col, preferred_element_type=jnp.float32)  # (C_out, TL)
        y = acc + b                 # fused conv-bias + BN shift (f32)
        y = jnp.maximum(y, 0.0)     # ReLU (f32 epilogue; cast only at store)
        o_ref[n] = y.astype(o_ref.dtype)


def conv_block_forward(x, weight, bias, gamma, beta, running_mean, running_var,
                       eps=1e-5, compute_dtype=jnp.bfloat16):
    """x: (N, C_in, L).  weight: (C_out, C_in, K).  Returns (N, C_out, L)."""
    N, C_in, L = x.shape
    C_out, _, K = weight.shape
    assert (K - 1) % 2 == 0, "only odd kernel sizes supported (matches module)"
    pad = (K - 1) // 2

    # ---- Fold BatchNorm (eval mode, running stats) into the conv params. ----
    scale = gamma / jnp.sqrt(running_var + eps)                 # (C_out,)
    w_fold = weight * scale[:, None, None]                      # (C_out,C_in,K)
    b_fold = (bias - running_mean) * scale + beta               # (C_out,)
    # Tap-major weight rows to match the kernel's im2col row ordering:
    # rows are [tap0: c_in 0..C_in-1, tap1: ..., ...]  -> (C_out, K*C_in)
    w2 = jnp.transpose(w_fold, (0, 2, 1)).reshape(C_out, K * C_in)
    w2 = w2.astype(compute_dtype)
    b2 = b_fold.reshape(C_out, 1).astype(jnp.float32)

    # ---- Lane-dense length tiling with halo, built once in the wrapper. ----
    L128 = ((L + 127) // 128) * 128
    TL = next(t for t in (512, 384, 256, 128) if L128 % t == 0)
    LT = L128 // TL
    TLh = TL + K - 1                                            # tile + halo
    NB = next(nb for nb in (8, 4, 2, 1) if N % nb == 0)         # batch block

    # Zero-pad: conv 'same' halo on the left, halo + lane padding on the right.
    x_pad = jnp.pad(x, ((0, 0), (0, 0), (pad, (L128 - L) + pad)))
    x_pad = x_pad.astype(compute_dtype)
    # Overlapping tiles (halo duplicated; ~2*pad/TL extra bytes): keeps the
    # BlockSpecs plain Blocked so the auto-pipeline double-buffers the DMAs.
    x_tiles = jnp.stack(
        [x_pad[:, :, j * TL: j * TL + TLh] for j in range(LT)], axis=1
    )  # (N, LT, C_in, TLh)

    kernel = functools.partial(_conv_block_kernel, num_taps=K)
    out = pl.pallas_call(
        kernel,
        out_shape=jax.ShapeDtypeStruct((N, C_out, L128), x.dtype),
        grid_spec=pltpu.PrefetchScalarGridSpec(
            num_scalar_prefetch=0,
            grid=(N // NB, LT),
            in_specs=[
                pl.BlockSpec((NB, None, C_in, TLh), lambda i, j: (i, j, 0, 0)),
                pl.BlockSpec((C_out, K * C_in), lambda i, j: (0, 0)),
                pl.BlockSpec((C_out, 1), lambda i, j: (0, 0)),
            ],
            out_specs=pl.BlockSpec((NB, C_out, TL), lambda i, j: (i, 0, j)),
        ),
        compiler_params=pltpu.CompilerParams(
            dimension_semantics=("parallel", "parallel")),
    )(x_tiles, w2, b2)

    return out[:, :, :L]


def _reference(x, weight, bias, gamma, beta, running_mean, running_var,
               eps=1e-5):
    """Pure-JAX reference (same eval-mode semantics) for sanity checking."""
    K = weight.shape[-1]
    pad = (K - 1) // 2
    y = jax.lax.conv_general_dilated(
        x, weight, window_strides=(1,), padding=[(pad, pad)],
        dimension_numbers=("NCH", "OIH", "NCH"))
    y = y + bias[None, :, None]
    scale = gamma / jnp.sqrt(running_var + eps)
    shift = beta - running_mean * scale
    y = y * scale[None, :, None] + shift[None, :, None]
    return jnp.maximum(y, 0.0)


if __name__ == "__main__":
    # Small shapes consistent with Conv1d: batch=2, channels=4, seq_len=16, k=5.
    N, C_in, C_out, L, K = 2, 4, 4, 16, 5

    key = jax.random.PRNGKey(0)
    kx, kw, kb, kg, kbt = jax.random.split(key, 5)

    x = jax.random.normal(kx, (N, C_in, L), dtype=jnp.float32)

    # Deterministic parameter init (PyTorch-style uniform bound for conv).
    fan_in = C_in * K
    bound = 1.0 / (fan_in ** 0.5)
    weight = jax.random.uniform(kw, (C_out, C_in, K), jnp.float32, -bound, bound)
    bias = jax.random.uniform(kb, (C_out,), jnp.float32, -bound, bound)

    # BatchNorm parameters (gamma/beta random for a non-trivial check;
    # running stats at their PyTorch init values: mean=0, var=1).
    gamma = 1.0 + 0.1 * jax.random.normal(kg, (C_out,), jnp.float32)
    beta = 0.1 * jax.random.normal(kbt, (C_out,), jnp.float32)
    running_mean = jnp.zeros((C_out,), jnp.float32)
    running_var = jnp.ones((C_out,), jnp.float32)

    ref = _reference(x, weight, bias, gamma, beta, running_mean, running_var)

    # f32 MXU path: exact-ish check.
    out_f32 = conv_block_forward(x, weight, bias, gamma, beta,
                                 running_mean, running_var,
                                 compute_dtype=jnp.float32)
    out_f32 = jax.block_until_ready(out_f32)
    assert out_f32.shape == (N, C_out, L)
    assert jnp.allclose(out_f32, ref, atol=1e-5, rtol=1e-5), "f32 mismatch"

    # bf16 MXU path (default, f32 accumulation): looser tolerance.
    out_bf16 = conv_block_forward(x, weight, bias, gamma, beta,
                                  running_mean, running_var,
                                  compute_dtype=jnp.bfloat16)
    out_bf16 = jax.block_until_ready(out_bf16)
    assert out_bf16.shape == (N, C_out, L)
    assert jnp.allclose(out_bf16, ref, atol=3e-2, rtol=3e-2), "bf16 mismatch"

    print("KERNEL_OK")
</pallas_src>

<mosaic_0001>
module attributes {stable_mosaic.version = 11 : i64} {
  func.func @_conv_block_kernel(%arg0: i32, %arg1: i32, %arg2: memref<2x1x4x132xf32, #tpu.memory_space<vmem>>, %arg3: memref<4x20xf32, #tpu.memory_space<vmem>>, %arg4: memref<4x1xf32, #tpu.memory_space<vmem>>, %arg5: memref<2x4x128xf32, #tpu.memory_space<vmem>>) attributes {dimension_semantics = [#tpu.dimension_semantics<parallel>, #tpu.dimension_semantics<parallel>], iteration_bounds = array<i64: 1, 1>, scalar_prefetch = 0 : i64, scratch_operands = 0 : i64, tpu.core_type = #tpu.core_type<tc>, window_params = [{transform_indices = @transform_0, window_bounds = array<i64: 2, 1, 4, 132>}, {pipeline_mode = #tpu.pipeline_mode<synchronous>, transform_indices = @transform_1, window_bounds = array<i64: 4, 20>}, {pipeline_mode = #tpu.pipeline_mode<synchronous>, transform_indices = @transform_2, window_bounds = array<i64: 4, 1>}, {transform_indices = @transform_3, window_bounds = array<i64: 2, 4, 128>}]} {
    %c0 = arith.constant 0 : index
    %c0_0 = arith.constant 0 : index
    %0 = vector.load %arg3[%c0, %c0_0] : memref<4x20xf32, #tpu.memory_space<vmem>>, vector<4x20xf32>
    %c0_1 = arith.constant 0 : index
    %c0_2 = arith.constant 0 : index
    %1 = vector.load %arg4[%c0_1, %c0_2] : memref<4x1xf32, #tpu.memory_space<vmem>>, vector<4x1xf32>
    %c0_3 = arith.constant 0 : index
    %c0_4 = arith.constant 0 : index
    %c0_5 = arith.constant 0 : index
    %c0_6 = arith.constant 0 : index
    %2 = vector.load %arg2[%c0_3, %c0_4, %c0_5, %c0_6] : memref<2x1x4x132xf32, #tpu.memory_space<vmem>>, vector<1x1x4x132xf32>
    %3 = vector.shape_cast %2 : vector<1x1x4x132xf32> to vector<4x132xf32>
    %4 = vector.extract_strided_slice %3 {offsets = [0, 0], sizes = [4, 128], strides = [1, 1]} : vector<4x132xf32> to vector<4x128xf32>
    %5 = vector.extract_strided_slice %3 {offsets = [0, 1], sizes = [4, 128], strides = [1, 1]} : vector<4x132xf32> to vector<4x128xf32>
    %6 = vector.extract_strided_slice %3 {offsets = [0, 2], sizes = [4, 128], strides = [1, 1]} : vector<4x132xf32> to vector<4x128xf32>
    %7 = vector.extract_strided_slice %3 {offsets = [0, 3], sizes = [4, 128], strides = [1, 1]} : vector<4x132xf32> to vector<4x128xf32>
    %8 = vector.extract_strided_slice %3 {offsets = [0, 4], sizes = [4, 128], strides = [1, 1]} : vector<4x132xf32> to vector<4x128xf32>
    %9 = tpu.concatenate %4, %5, %6, %7, %8 in 0 : vector<4x128xf32>, vector<4x128xf32>, vector<4x128xf32>, vector<4x128xf32>, vector<4x128xf32> -> vector<20x128xf32>
    %cst = arith.constant dense<0.000000e+00> : vector<4x128xf32>
    %10 = tpu.matmul %0, %9, %cst {dimension_numbers = #tpu.dot_dimension_numbers<[1], [0], [0], [1], [0, 0, 1, 1], [], []>} : vector<4x20xf32>, vector<20x128xf32>, vector<4x128xf32> -> vector<4x128xf32>
    %11 = vector.broadcast %1 : vector<4x1xf32> to vector<4x128xf32>
    %12 = arith.addf %10, %11 : vector<4x128xf32>
    %cst_7 = arith.constant 0.000000e+00 : f32
    %13 = vector.broadcast %cst_7 : f32 to vector<4x128xf32>
    %14 = arith.maximumf %12, %13 : vector<4x128xf32>
    %c0_8 = arith.constant 0 : index
    %c0_9 = arith.constant 0 : index
    %c0_10 = arith.constant 0 : index
    %15 = vector.load %arg5[%c0_8, %c0_9, %c0_10] : memref<2x4x128xf32, #tpu.memory_space<vmem>>, vector<1x4x128xf32>
    %16 = vector.shape_cast %15 : vector<1x4x128xf32> to vector<4x128xf32>
    %17 = vector.shape_cast %14 : vector<4x128xf32> to vector<1x4x128xf32>
    tpu.vector_store %arg5[%c0_8, %c0_9, %c0_10], %17 {strides = array<i32>} : memref<2x4x128xf32, #tpu.memory_space<vmem>>, vector<1x4x128xf32>,
    %c1 = arith.constant 1 : index
    %c0_11 = arith.constant 0 : index
    %c0_12 = arith.constant 0 : index
    %c0_13 = arith.constant 0 : index
    %18 = vector.load %arg2[%c1, %c0_11, %c0_12, %c0_13] : memref<2x1x4x132xf32, #tpu.memory_space<vmem>>, vector<1x1x4x132xf32>
    %19 = vector.shape_cast %18 : vector<1x1x4x132xf32> to vector<4x132xf32>
    %20 = vector.extract_strided_slice %19 {offsets = [0, 0], sizes = [4, 128], strides = [1, 1]} : vector<4x132xf32> to vector<4x128xf32>
    %21 = vector.extract_strided_slice %19 {offsets = [0, 1], sizes = [4, 128], strides = [1, 1]} : vector<4x132xf32> to vector<4x128xf32>
    %22 = vector.extract_strided_slice %19 {offsets = [0, 2], sizes = [4, 128], strides = [1, 1]} : vector<4x132xf32> to vector<4x128xf32>
    %23 = vector.extract_strided_slice %19 {offsets = [0, 3], sizes = [4, 128], strides = [1, 1]} : vector<4x132xf32> to vector<4x128xf32>
    %24 = vector.extract_strided_slice %19 {offsets = [0, 4], sizes = [4, 128], strides = [1, 1]} : vector<4x132xf32> to vector<4x128xf32>
    %25 = tpu.concatenate %20, %21, %22, %23, %24 in 0 : vector<4x128xf32>, vector<4x128xf32>, vector<4x128xf32>, vector<4x128xf32>, vector<4x128xf32> -> vector<20x128xf32>
    %cst_14 = arith.constant dense<0.000000e+00> : vector<4x128xf32>
    %26 = tpu.matmul %0, %25, %cst_14 {dimension_numbers = #tpu.dot_dimension_numbers<[1], [0], [0], [1], [0, 0, 1, 1], [], []>} : vector<4x20xf32>, vector<20x128xf32>, vector<4x128xf32> -> vector<4x128xf32>
    %27 = vector.broadcast %1 : vector<4x1xf32> to vector<4x128xf32>
    %28 = arith.addf %26, %27 : vector<4x128xf32>
    %cst_15 = arith.constant 0.000000e+00 : f32
    %29 = vector.broadcast %cst_15 : f32 to vector<4x128xf32>
    %30 = arith.maximumf %28, %29 : vector<4x128xf32>
    %c1_16 = arith.constant 1 : index
    %c0_17 = arith.constant 0 : index
    %c0_18 = arith.constant 0 : index
    %31 = vector.load %arg5[%c1_16, %c0_17, %c0_18] : memref<2x4x128xf32, #tpu.memory_space<vmem>>, vector<1x4x128xf32>
    %32 = vector.shape_cast %31 : vector<1x4x128xf32> to vector<4x128xf32>
    %33 = vector.shape_cast %30 : vector<4x128xf32> to vector<1x4x128xf32>
    tpu.vector_store %arg5[%c1_16, %c0_17, %c0_18], %33 {strides = array<i32>} : memref<2x4x128xf32, #tpu.memory_space<vmem>>, vector<1x4x128xf32>,
    return
  }
  func.func @transform_0(%arg0: i32, %arg1: i32) -> (i32, i32, i32, i32) {
    %c0_i32 = arith.constant 0 : i32
    %c0_i32_0 = arith.constant 0 : i32
    %c0_i32_1 = arith.constant 0 : i32
    return %arg0, %arg1, %c0_i32, %c0_i32_0 : i32, i32, i32, i32
  }
  func.func @transform_1(%arg0: i32, %arg1: i32) -> (i32, i32) {
    %c0_i32 = arith.constant 0 : i32
    %c0_i32_0 = arith.constant 0 : i32
    %c0_i32_1 = arith.constant 0 : i32
    return %c0_i32, %c0_i32_0 : i32, i32
  }
  func.func @transform_2(%arg0: i32, %arg1: i32) -> (i32, i32) {
    %c0_i32 = arith.constant 0 : i32
    %c0_i32_0 = arith.constant 0 : i32
    %c0_i32_1 = arith.constant 0 : i32
    return %c0_i32, %c0_i32_0 : i32, i32
  }
  func.func @transform_3(%arg0: i32, %arg1: i32) -> (i32, i32, i32) {
    %c0_i32 = arith.constant 0 : i32
    %c0_i32_0 = arith.constant 0 : i32
    return %arg0, %c0_i32, %arg1 : i32, i32, i32
  }
}

</mosaic_0001>

<llo_original>
// kernel: tpu_custom_call.1
$region0: #{tpu_custom_call.1}
  #allocation0 [shape = 'u32[]', space=smem, size = 0x4, offset = 0x4, fixed_abs, tag = 'smem constant byte address 0x4 - core index']
  #allocation1 [shape = 'u32[144,128]{1,0:T(1,128)}', space=vmem, size = 0x12000, scoped, tag = 'internal scratch']
  %s0 = inlined_call_operand.hbm [shape: f32[2,1,4,132], index: 0, kind: input, shape index: {}]
  %s1 = inlined_call_operand.vmem [shape: f32[4,20], index: 1, kind: input, shape index: {}]
  %s2 = inlined_call_operand.vmem [shape: f32[4,1], index: 2, kind: input, shape index: {}]
  %s3 = inlined_call_operand.hbm [shape: f32[2,4,128], index: 3, kind: output, shape index: {}]
  %s4 = sld [smem:[#allocation0]]
  $region26: #{tpu_custom_call.1} parent=0
    _
  %s6 = ssub.s32 1, %s4
  %s7 = scalar_select 0, %s6, %s4
  $region1: #{tpu_custom_call.1} parent=0
    #allocation2 [shape = 'u8[8192]{0}', space=vmem, size = 0x2000, scoped, tag = 'input window, operand 0, single buffered']
    #allocation3 [shape = 's32[1]{0}', space=sflag, size = 0x4, scoped, tag = 'scoped memory for tpu_custom_call.1']
    #allocation4 [shape = 's32[1]{0}', space=sflag, size = 0x4, scoped, tag = 'scoped memory for tpu_custom_call.1']
    #allocation5 [shape = 'u8[4096]{0}', space=vmem, size = 0x1000, scoped, tag = 'output window, operand 0, single buffered']
    %8 = vsyncpa [#allocation3], 0
    %9 = vsyncpa [#allocation4], 0
    // Predicated region
    $region2: #{tpu_custom_call.1} parent=1 // pred_check
      _
    $region3: #{tpu_custom_call.1} parent=1 // pred_check_branch
      %11 = sbr.rel (0) target = $region5
    $region4: #{tpu_custom_call.1} parent=1 // pred_region
      %s13 = ssub.s32 256, 256
      %14 = vsyncadd [#allocation3], %s13
      %s15 = sshll.u32 [#allocation2], 4
      %s16 = int_to_ptr.vmem [resolvable:$true] %s15
      %21 = dma.hbm_to_vmem [thread:$0]  %s0, 256, %s16, [#allocation3], 128, 128, 8
    $region5: #{tpu_custom_call.1} parent=1 // pred_fallthru
      _
    // Predicated region
    $region6: #{tpu_custom_call.1} parent=1 // pred_check
      _
    $region7: #{tpu_custom_call.1} parent=1 // pred_check_branch
      %23 = sbr.rel (0) target = $region9
    $region8: #{tpu_custom_call.1} parent=1 // pred_region
      _
    $region9: #{tpu_custom_call.1} parent=1 // pred_fallthru
      _
    // Predicated region
    $region10: #{tpu_custom_call.1} parent=1 // pred_check
      _
    $region11: #{tpu_custom_call.1} parent=1 // pred_check_branch
      %25 = sbr.rel (0) target = $region13
    $region12: #{tpu_custom_call.1} parent=1 // pred_region
      _
    $region13: #{tpu_custom_call.1} parent=1 // pred_fallthru
      _
    // Predicated region
    $region14: #{tpu_custom_call.1} parent=1 // pred_check
      _
    $region15: #{tpu_custom_call.1} parent=1 // pred_check_branch
      %27 = sbr.rel (0) target = $region17
    $region16: #{tpu_custom_call.1} parent=1 // pred_region
      %28 = dma.done [#allocation3], 256
    $region17: #{tpu_custom_call.1} parent=1 // pred_fallthru
      _
    %v29 = vld [vmem:[%s1] sm:$0xf]
    %v30 = vld [vmem:[%s2] sm:$0xf]
    %v31 = vld [vmem:[#allocation2] sm:$0xff]
    %v33 = vcombine.low %v31, %v31
    %34 = vrot.lane.b32.xlu0 %v33, 127
    %v35 = vpop.permute.xlu0 %34
    %36 = vrot.lane.b32.xlu0 %v31, 127
    %v37 = vpop.permute.xlu0 %36
    %vm38 = vcmask 1039360
    %v39 = vsel %vm38, %v35, %v37
    %v41 = vcombine.high %v31, %v31
    %42 = vrot.lane.b32.xlu0 %v31, 126
    %v43 = vpop.permute.xlu0 %42
    %44 = vrot.lane.b32.xlu0 %v41, 126
    %v45 = vpop.permute.xlu0 %44
    %vm46 = vcmask 1031168
    %v47 = vsel %vm46, %v43, %v45
    %49 = vrot.lane.b32.xlu0 %v33, 125
    %v50 = vpop.permute.xlu0 %49
    %51 = vrot.lane.b32.xlu0 %v31, 125
    %v52 = vpop.permute.xlu0 %51
    %vm53 = vcmask 1022976
    %v54 = vsel %vm53, %v50, %v52
    %56 = vrot.lane.b32.xlu0 %v31, 124
    %v57 = vpop.permute.xlu0 %56
    %58 = vrot.lane.b32.xlu0 %v41, 124
    %v59 = vpop.permute.xlu0 %58
    %vm60 = vcmask 1014784
    %v61 = vsel %vm60, %v57, %v59
    %vm62 = vcmask 1043456
    %v63 = vsel %vm62, %v31, %v39
    %v64 = vsel %vm62, %v47, %v54
    %66 = vset.pattern.permute.xlu0 0
    %67 = vperm.xlu0 %66, %v30
    %v68 = vpop.permute.xlu0 %67
    %vm70 = vcmask 162816
    %v72 = vsel %vm70, %v29, 0
    %v74 = vsel %vm62, %v61, 0
    %76 = vmatprep.subr.mxu0 0.0
    %77 = vmatpush1.msra.mxu0 0.0
    %78 = vmatprep.subr.mxu0 0.0
    %79 = vmatpush1.msra.mxu0 0.0
    %80 = vmatprep.subr.mxu0 0.0
    %81 = vmatpush1.msra.mxu0 0.0
    %82 = vmatprep.subr.mxu0 0.0
    %83 = vmatpush1.msra.mxu0 0.0
    %84 = vmatprep.subr.mxu0 0.0
    %85 = vmatpush1.msra.mxu0 0.0
    %86 = vmatprep.subr.mxu0 0.0
    %87 = vmatpush1.msra.mxu0 0.0
    %88 = vmatprep.subr.mxu0 0.0
    %89 = vmatpush1.msra.mxu0 0.0
    %90 = vmatprep.subr.mxu0 0.0
    %91 = vmatpush1.msra.mxu0 0.0
    %92 = vmatprep.subr.mxu0 0.0
    %93 = vmatpush1.msra.mxu0 0.0
    %94 = vmatprep.subr.mxu0 0.0
    %95 = vmatpush1.msra.mxu0 0.0
    %96 = vmatprep.subr.mxu0 0.0
    %97 = vmatpush1.msra.mxu0 0.0
    %98 = vmatprep.subr.mxu0 0.0
    %99 = vmatpush1.msra.mxu0 0.0
    %100 = vmatprep.subr.mxu0 0.0
    %101 = vmatpush1.msra.mxu0 0.0
    %102 = vmatprep.subr.mxu0 0.0
    %103 = vmatpush1.msra.mxu0 %v74
    %104 = vmatprep.subr.mxu0 0.0
    %105 = vmatpush1.msra.mxu0 %v64
    %106 = vmatprep.subr.mxu0 0.0
    %107 = vmatpush1.msra.mxu0 %v63
    %108 = vmatprep.subr.mxu0 0.0
    %109 = vmatpush2.msra.mxu0 0.0
    %110 = vmatprep.subr.mxu0 0.0
    %111 = vmatpush2.msra.mxu0 0.0
    %112 = vmatprep.subr.mxu0 0.0
    %113 = vmatpush2.msra.mxu0 0.0
    %114 = vmatprep.subr.mxu0 0.0
    %115 = vmatpush2.msra.mxu0 0.0
    %116 = vmatprep.subr.mxu0 0.0
    %117 = vmatpush2.msra.mxu0 0.0
    %118 = vmatprep.subr.mxu0 0.0
    %119 = vmatpush2.msra.mxu0 0.0
    %120 = vmatprep.subr.mxu0 0.0
    %121 = vmatpush2.msra.mxu0 0.0
    %122 = vmatprep.subr.mxu0 0.0
    %123 = vmatpush2.msra.mxu0 0.0
    %124 = vmatprep.subr.mxu0 0.0
    %125 = vmatpush2.msra.mxu0 0.0
    %126 = vmatprep.subr.mxu0 0.0
    %127 = vmatpush2.msra.mxu0 0.0
    %128 = vmatprep.subr.mxu0 0.0
    %129 = vmatpush2.msra.mxu0 0.0
    %130 = vmatprep.subr.mxu0 0.0
    %131 = vmatpush2.msra.mxu0 0.0
    %132 = vmatprep.subr.mxu0 0.0
    %133 = vmatpush2.msra.mxu0 0.0
    %134 = vmatprep.subr.mxu0 0.0
    %135 = vmatpush2.msra.mxu0 0.0
    %136 = vmatprep.subr.mxu0 0.0
    %137 = vmatpush2.msra.mxu0 0.0
    %138 = vmatprep.subr.mxu0 0.0
    %139 = vmatpush2.msra.mxu0 0.0
    %140 = vmatprep.mubr.f32.mxu0 0.0
    %141 = vmatmul.mubr.f32.gmra.mxu0 %v72
    %v142 = vpop.f32.mrf.mxu0
    %v143 = vadd.f32 %v68, %v142
    %v144 = vpop.f32.mrf.mxu0
    %145 = vdwg.mxu0
    %v146 = vmax.f32 %v143, 0.0
    %147 = vst [vmem:[#allocation5] sm:$0xf] %v146
    %s148 = scalar_lea.vmem [#allocation2], 8
    %v149 = vld [vmem:[%s148] sm:$0xff]
    %v151 = vcombine.low %v149, %v149
    %152 = vrot.lane.b32.xlu0 %v151, 127
    %v153 = vpop.permute.xlu0 %152
    %154 = vrot.lane.b32.xlu0 %v149, 127
    %v155 = vpop.permute.xlu0 %154
    %v156 = vsel %vm38, %v153, %v155
    %v158 = vcombine.high %v149, %v149
    %159 = vrot.lane.b32.xlu0 %v149, 126
    %v160 = vpop.permute.xlu0 %159
    %161 = vrot.lane.b32.xlu0 %v158, 126
    %v162 = vpop.permute.xlu0 %161
    %v163 = vsel %vm46, %v160, %v162
    %165 = vrot.lane.b32.xlu0 %v151, 125
    %v166 = vpop.permute.xlu0 %165
    %167 = vrot.lane.b32.xlu0 %v149, 125
    %v168 = vpop.permute.xlu0 %167
    %v169 = vsel %vm53, %v166, %v168
    %171 = vrot.lane.b32.xlu0 %v149, 124
    %v172 = vpop.permute.xlu0 %171
    %173 = vrot.lane.b32.xlu0 %v158, 124
    %v174 = vpop.permute.xlu0 %173
    %v175 = vsel %vm60, %v172, %v174
    %v176 = vsel %vm62, %v149, %v156
    %v177 = vsel %vm62, %v163, %v169
    %v178 = vsel %vm62, %v175, 0
    %180 = vmatprep.subr.mxu0 0.0
    %181 = vmatpush1.msra.mxu0 0.0
    %182 = vmatprep.subr.mxu0 0.0
    %183 = vmatpush1.msra.mxu0 0.0
    %184 = vmatprep.subr.mxu0 0.0
    %185 = vmatpush1.msra.mxu0 0.0
    %186 = vmatprep.subr.mxu0 0.0
    %187 = vmatpush1.msra.mxu0 0.0
    %188 = vmatprep.subr.mxu0 0.0
    %189 = vmatpush1.msra.mxu0 0.0
    %190 = vmatprep.subr.mxu0 0.0
    %191 = vmatpush1.msra.mxu0 0.0
    %192 = vmatprep.subr.mxu0 0.0
    %193 = vmatpush1.msra.mxu0 0.0
    %194 = vmatprep.subr.mxu0 0.0
    %195 = vmatpush1.msra.mxu0 0.0
    %196 = vmatprep.subr.mxu0 0.0
    %197 = vmatpush1.msra.mxu0 0.0
    %198 = vmatprep.subr.mxu0 0.0
    %199 = vmatpush1.msra.mxu0 0.0
    %200 = vmatprep.subr.mxu0 0.0
    %201 = vmatpush1.msra.mxu0 0.0
    %202 = vmatprep.subr.mxu0 0.0
    %203 = vmatpush1.msra.mxu0 0.0
    %204 = vmatprep.subr.mxu0 0.0
    %205 = vmatpush1.msra.mxu0 0.0
    %206 = vmatprep.subr.mxu0 0.0
    %207 = vmatpush1.msra.mxu0 %v178
    %208 = vmatprep.subr.mxu0 0.0
    %209 = vmatpush1.msra.mxu0 %v177
    %210 = vmatprep.subr.mxu0 0.0
    %211 = vmatpush1.msra.mxu0 %v176
    %212 = vmatprep.subr.mxu0 0.0
    %213 = vmatpush2.msra.mxu0 0.0
    %214 = vmatprep.subr.mxu0 0.0
    %215 = vmatpush2.msra.mxu0 0.0
    %216 = vmatprep.subr.mxu0 0.0
    %217 = vmatpush2.msra.mxu0 0.0
    %218 = vmatprep.subr.mxu0 0.0
    %219 = vmatpush2.msra.mxu0 0.0
    %220 = vmatprep.subr.mxu0 0.0
    %221 = vmatpush2.msra.mxu0 0.0
    %222 = vmatprep.subr.mxu0 0.0
    %223 = vmatpush2.msra.mxu0 0.0
    %224 = vmatprep.subr.mxu0 0.0
    %225 = vmatpush2.msra.mxu0 0.0
    %226 = vmatprep.subr.mxu0 0.0
    %227 = vmatpush2.msra.mxu0 0.0
    %228 = vmatprep.subr.mxu0 0.0
    %229 = vmatpush2.msra.mxu0 0.0
    %230 = vmatprep.subr.mxu0 0.0
    %231 = vmatpush2.msra.mxu0 0.0
    %232 = vmatprep.subr.mxu0 0.0
    %233 = vmatpush2.msra.mxu0 0.0
    %234 = vmatprep.subr.mxu0 0.0
    %235 = vmatpush2.msra.mxu0 0.0
    %236 = vmatprep.subr.mxu0 0.0
    %237 = vmatpush2.msra.mxu0 0.0
    %238 = vmatprep.subr.mxu0 0.0
    %239 = vmatpush2.msra.mxu0 0.0
    %240 = vmatprep.subr.mxu0 0.0
    %241 = vmatpush2.msra.mxu0 0.0
    %242 = vmatprep.subr.mxu0 0.0
    %243 = vmatpush2.msra.mxu0 0.0
    %244 = vmatprep.mubr.f32.mxu0 0.0
    %245 = vmatmul.mubr.f32.gmra.mxu0 %v72
    %v246 = vpop.f32.mrf.mxu0
    %v247 = vadd.f32 %v68, %v246
    %v248 = vpop.f32.mrf.mxu0
    %249 = vdwg.mxu0
    %v250 = vmax.f32 %v247, 0.0
    %s251 = scalar_lea.vmem [#allocation5], 4
    %252 = vst [vmem:[%s251] sm:$0xf] %v250
    // Predicated region
    $region18: #{tpu_custom_call.1} parent=1 // pred_check
      _
    $region19: #{tpu_custom_call.1} parent=1 // pred_check_branch
      %254 = sbr.rel (0) target = $region21
    $region20: #{tpu_custom_call.1} parent=1 // pred_region
      %s256 = ssub.s32 128, 128
      %257 = vsyncadd [#allocation4], %s256
      %s258 = sshll.u32 [#allocation5], 4
      %s259 = int_to_ptr.vmem [resolvable:$true] %s258
      %264 = dma.vmem_to_hbm [thread:$0]  %s259, 128, %s3, [#allocation4], 64, 64, 4
    $region21: #{tpu_custom_call.1} parent=1 // pred_fallthru
      _
    // Predicated region
    $region22: #{tpu_custom_call.1} parent=1 // pred_check
      _
    $region23: #{tpu_custom_call.1} parent=1 // pred_check_branch
      %266 = sbr.rel (0) target = $region25
    $region24: #{tpu_custom_call.1} parent=1 // pred_region
      %267 = dma.done [#allocation4], 128
    $region25: #{tpu_custom_call.1} parent=1 // pred_fallthru
      _
    %268 = vsyncpa [#allocation3], 1
    %269 = vsyncpa [#allocation4], 1

</llo_original>
